<compile_context>
chip_gen: v5e
topology: v5e:2x2
jax: 0.10.0
libtpu: 0.0.40
codegen_flags: <defaults>
</compile_context>

<pallas_src>
import functools

import jax
import jax.numpy as jnp
from jax.experimental import pallas as pl
from jax.experimental.pallas import tpu as pltpu

NUM_CLASSES = 9
DEFAULT_TILE_B = 32768   # lanes per grid step; ~1.3 MB HBM / ~8-9 MiB VMEM per step
N_CORE_SPLITS = 2        # leading "parallel" grid axis (2 TCs on v7x; free elsewhere)


def _ce_kernel(pred_ref, tgt_ref, w_ref, out_ref, acc_base, acc_wt=None, *,
               label_smoothing, num_classes, w_total, n_inner, tile, total_b,
               need_wt):
    # pred_ref: (C, T) float   (class on sublanes, batch on lanes)
    # tgt_ref : (1, T) int32
    # w_ref   : (C, 1) float32
    # out_ref : (8, 128) float32 partial block for this core: [0,0]=base, [0,1]=wt
    # acc_*   : (1, T) float32 VMEM scratch, persistent across the inner axis
    c = pl.program_id(0)          # core-split index ("parallel")
    i = pl.program_id(1)          # batch-tile index ("arbitrary")

    @pl.when(i == 0)
    def _init():
        acc_base[...] = jnp.zeros_like(acc_base)
        if need_wt:
            acc_wt[...] = jnp.zeros_like(acc_wt)

    x = pred_ref[...].astype(jnp.float32)            # (C, T)
    t = tgt_ref[...]                                 # (1, T) int32
    w = w_ref[...].astype(jnp.float32)               # (C, 1)
    C, T = x.shape

    # Lane validity vs the true (unpadded, logical) column index.  The last
    # tile of each core may be a ragged / clamped block with undefined data,
    # so mask x itself before the softmax, not just the per-sample outputs.
    col0 = (c * n_inner + i) * tile
    lane = jax.lax.broadcasted_iota(jnp.int32, (1, T), 1)
    lane_valid = (col0 + lane) < total_b             # (1, T) bool
    x = jnp.where(lane_valid, x, 0.0)

    # Effective target: out-of-range / padded / ragged lanes -> -1 (match nothing).
    t_eff = jnp.where(lane_valid & (t >= 0) & (t < C), t, -1)
    class_ids = jax.lax.broadcasted_iota(jnp.int32, (C, T), 0)
    onehot = class_ids == t_eff                      # (C, T) bool

    # log-partition per sample: logZ = m + log(sum exp(x - m))
    m = jnp.max(x, axis=0, keepdims=True)            # (1, T)
    lse = jnp.log(jnp.sum(jnp.exp(x - m), axis=0, keepdims=True))
    logz = m + lse                                   # (1, T), finite even when masked

    # Folded algebra: no logp / wlogp materialization.
    x_y = jnp.sum(jnp.where(onehot, x, 0.0), axis=0, keepdims=True)   # x[y]   (0 if invalid)
    wt_t = jnp.sum(jnp.where(onehot, w, 0.0), axis=0, keepdims=True)  # w[y]   (0 if invalid)
    nll_t = wt_t * (logz - x_y)                      # -w[y]*logp[y]

    ls = label_smoothing
    if ls > 0.0:
        valid = (t_eff >= 0).astype(jnp.float32)     # (1, T)
        sum_wx = jnp.sum(w * x, axis=0, keepdims=True)
        smooth_t = (w_total * logz - sum_wx) * valid  # -sum_c w[c]*logp[c]
        base_t = (1.0 - ls) * nll_t + (ls / num_classes) * smooth_t
    else:
        base_t = nll_t

    acc_base[...] += base_t
    if need_wt:
        acc_wt[...] += wt_t

    @pl.when(i == pl.num_programs(1) - 1)
    def _finalize():
        # Single cross-lane (XLU) reduce per core, only at the last step.
        base_sum = jnp.sum(acc_base[...])
        row = jax.lax.broadcasted_iota(jnp.int32, out_ref.shape, 0)
        col = jax.lax.broadcasted_iota(jnp.int32, out_ref.shape, 1)
        vals = jnp.where((row == 0) & (col == 0), base_sum, 0.0)
        if need_wt:
            wt_sum = jnp.sum(acc_wt[...])
            vals = jnp.where((row == 0) & (col == 1), wt_sum, vals)
        out_ref[...] = vals


def cross_entropy_loss(predicted, target, weights=None, reduction="mean",
                       label_smoothing=0.0, tile_b=DEFAULT_TILE_B):
    """JAX/Pallas equivalent of the torch CrossEntropyLoss module's forward.

    predicted: any shape that flattens to [-1, 9], float
    target:    any shape that flattens to [-1], integer class ids
    returns:   scalar float32 loss
    """
    assert reduction in ("mean", "sum")
    assert tile_b > 0 and tile_b % 128 == 0
    if weights is None:
        weights = [1.0] * NUM_CLASSES
    w_list = [float(v) for v in weights]
    assert len(w_list) == NUM_CLASSES
    w = jnp.asarray(w_list, dtype=jnp.float32).reshape(NUM_CLASSES, 1)
    w_total = float(sum(w_list))                     # compile-time constant

    pred = jnp.asarray(predicted)
    if not jnp.issubdtype(pred.dtype, jnp.floating):
        pred = pred.astype(jnp.float32)
    pred = pred.reshape(-1, NUM_CLASSES)
    B = pred.shape[0]
    tgt = jnp.asarray(target).reshape(-1).astype(jnp.int32)

    # Pad the batch only to the next lane multiple (<= 127 extra columns),
    # never to a tile multiple; ragged tail blocks are masked in-kernel.
    b128 = ((B + 127) // 128) * 128
    tile = min(tile_b, b128)

    # TODO(synk): the (C, B) transpose is one unavoidable HBM copy given the
    # (B, C) input contract; feed class-major logits upstream to eliminate it.
    pred_t = pred.T                                  # (C, B) lane-dense layout
    if b128 != B:
        # XLA fuses this small pad with the transpose copy (single materialization).
        pred_t = jnp.pad(pred_t, ((0, 0), (0, b128 - B)))
        tgt = jnp.pad(tgt, (0, b128 - B), constant_values=-1)
    tgt = tgt.reshape(1, b128)

    n_blocks = (b128 + tile - 1) // tile
    n_inner = (n_blocks + N_CORE_SPLITS - 1) // N_CORE_SPLITS
    last_block = n_blocks - 1
    need_wt = (reduction == "mean")
    ls = float(label_smoothing)

    kernel = functools.partial(
        _ce_kernel, label_smoothing=ls, num_classes=NUM_CLASSES,
        w_total=w_total, n_inner=n_inner, tile=tile, total_b=B,
        need_wt=need_wt)

    def col_map(c, i):
        # Clamp the (at most one) overshoot block of the core split; the kernel
        # masks it out via the logical column index, so it contributes zero.
        return (0, jnp.minimum(c * n_inner + i, last_block))

    scratch = [pltpu.VMEM((1, tile), jnp.float32)]   # acc_base
    if need_wt:
        scratch.append(pltpu.VMEM((1, tile), jnp.float32))  # acc_wt

    out = pl.pallas_call(
        kernel,
        out_shape=jax.ShapeDtypeStruct((N_CORE_SPLITS * 8, 128), jnp.float32),
        grid=(N_CORE_SPLITS, n_inner),
        in_specs=[
            pl.BlockSpec((NUM_CLASSES, tile), col_map),
            pl.BlockSpec((1, tile), col_map),
            pl.BlockSpec((NUM_CLASSES, 1), lambda c, i: (0, 0)),
        ],
        out_specs=pl.BlockSpec((8, 128), lambda c, i: (c, 0)),
        scratch_shapes=scratch,
        compiler_params=pltpu.CompilerParams(
            dimension_semantics=("parallel", "arbitrary"),
            vmem_limit_bytes=32 * 1024 * 1024,       # ~8-9 MiB used at tile=32768
        ),
    )(pred_t, tgt, w)

    base_total = out[0, 0] + out[8, 0]               # per-core partial sums
    if reduction == "mean":
        wt_total = out[0, 1] + out[8, 1]
        return base_total / wt_total
    return base_total


def _reference(pred, tgt, w, reduction, label_smoothing):
    # Pure-JAX reference mirroring torch semantics, for a sanity check.
    pred = pred.reshape(-1, NUM_CLASSES).astype(jnp.float32)
    tgt = tgt.reshape(-1).astype(jnp.int32)
    w = jnp.asarray(w, jnp.float32)
    logp = jax.nn.log_softmax(pred, axis=-1)
    nll = -w[tgt] * jnp.take_along_axis(logp, tgt[:, None], axis=1)[:, 0]
    smooth = -jnp.sum(w[None, :] * logp, axis=1)
    sum_wt = jnp.sum(w[tgt])
    ls = label_smoothing
    C = NUM_CLASSES
    if reduction == "mean":
        return (1 - ls) * jnp.sum(nll) / sum_wt + (ls / C) * jnp.sum(smooth) / sum_wt
    return (1 - ls) * jnp.sum(nll) + (ls / C) * jnp.sum(smooth)


if __name__ == "__main__":
    key = jax.random.PRNGKey(0)
    k1, k2, k3, k4, k5, k6 = jax.random.split(key, 6)

    # Non-trivial deterministic weights (module default is all ones).
    weights = [1.0, 0.5, 2.0, 1.0, 1.5, 1.0, 0.75, 1.25, 1.0]

    # Small shape matching the module: predicted [batch, 9], target [batch].
    batch = 8
    predicted = jax.random.normal(k1, (batch, NUM_CLASSES), dtype=jnp.float32)
    target = jax.random.randint(k2, (batch,), 0, NUM_CLASSES, dtype=jnp.int32)

    loss_mean = cross_entropy_loss(predicted, target, weights=weights,
                                   reduction="mean", label_smoothing=0.1)
    loss_sum = cross_entropy_loss(predicted, target, weights=weights,
                                  reduction="sum", label_smoothing=0.0)
    jax.block_until_ready((loss_mean, loss_sum))

    ref_mean = _reference(predicted, target, weights, "mean", 0.1)
    ref_sum = _reference(predicted, target, weights, "sum", 0.0)
    assert jnp.allclose(loss_mean, ref_mean, atol=1e-5, rtol=1e-5)
    assert jnp.allclose(loss_sum, ref_sum, atol=1e-5, rtol=1e-5)

    # Multi-tile + ragged-tail + clamped-block path:
    #   B=300 -> pad to 384, tile=128, 3 blocks, split 2 cores x 2 inner steps.
    batch2 = 300
    predicted2 = jax.random.normal(k3, (batch2, NUM_CLASSES), dtype=jnp.float32)
    target2 = jax.random.randint(k4, (batch2,), 0, NUM_CLASSES, dtype=jnp.int32)
    loss2 = cross_entropy_loss(predicted2, target2, weights=weights,
                               reduction="mean", label_smoothing=0.05, tile_b=128)
    jax.block_until_ready(loss2)
    ref2 = _reference(predicted2, target2, weights, "mean", 0.05)
    assert jnp.allclose(loss2, ref2, atol=1e-5, rtol=1e-5)

    # Even core split, default weights, sum reduction (acc_wt path disabled).
    batch3 = 1000
    predicted3 = jax.random.normal(k5, (batch3, NUM_CLASSES), dtype=jnp.float32)
    target3 = jax.random.randint(k6, (batch3,), 0, NUM_CLASSES, dtype=jnp.int32)
    loss3 = cross_entropy_loss(predicted3, target3, weights=None,
                               reduction="sum", label_smoothing=0.2, tile_b=256)
    jax.block_until_ready(loss3)
    ref3 = _reference(predicted3, target3, [1.0] * NUM_CLASSES, "sum", 0.2)
    assert jnp.allclose(loss3, ref3, atol=1e-3, rtol=1e-5)

    print("KERNEL_OK")
</pallas_src>

<mosaic_0001>
module attributes {stable_mosaic.version = 11 : i64} {
  func.func @_ce_kernel(%arg0: i32, %arg1: i32, %arg2: memref<9x128xf32, #tpu.memory_space<vmem>>, %arg3: memref<1x128xi32, #tpu.memory_space<vmem>>, %arg4: memref<9x1xf32, #tpu.memory_space<vmem>>, %arg5: memref<8x128xf32, #tpu.memory_space<vmem>>, %arg6: memref<1x128xf32, #tpu.memory_space<vmem>>, %arg7: memref<1x128xf32, #tpu.memory_space<vmem>>) attributes {dimension_semantics = [#tpu.dimension_semantics<parallel>, #tpu.dimension_semantics<arbitrary>], iteration_bounds = array<i64: 2, 1>, scalar_prefetch = 0 : i64, scratch_operands = 2 : i64, tpu.core_type = #tpu.core_type<tc>, window_params = [{transform_indices = @transform_0, window_bounds = array<i64: 9, 128>}, {transform_indices = @transform_1, window_bounds = array<i64: 1, 128>}, {pipeline_mode = #tpu.pipeline_mode<synchronous>, transform_indices = @transform_2, window_bounds = array<i64: 9, 1>}, {transform_indices = @transform_3, window_bounds = array<i64: 8, 128>}]} {
    %c0_i32 = arith.constant 0 : i32
    %0 = arith.cmpi eq, %arg1, %c0_i32 : i32
    %1 = arith.extui %0 : i1 to i32
    %c0_i32_0 = arith.constant 0 : i32
    %2 = arith.cmpi ne, %1, %c0_i32_0 : i32
    scf.if %2 {
      %cst_28 = arith.constant 0.000000e+00 : f32
      %76 = vector.broadcast %cst_28 : f32 to vector<1x128xf32>
      %c0_29 = arith.constant 0 : index
      %c0_30 = arith.constant 0 : index
      %77 = vector.load %arg6[%c0_29, %c0_30] : memref<1x128xf32, #tpu.memory_space<vmem>>, vector<1x128xf32>
      tpu.vector_store %arg6[%c0_29, %c0_30], %76 {strides = array<i32>} : memref<1x128xf32, #tpu.memory_space<vmem>>, vector<1x128xf32>,
      %cst_31 = arith.constant 0.000000e+00 : f32
      %78 = vector.broadcast %cst_31 : f32 to vector<1x128xf32>
      %c0_32 = arith.constant 0 : index
      %c0_33 = arith.constant 0 : index
      %79 = vector.load %arg7[%c0_32, %c0_33] : memref<1x128xf32, #tpu.memory_space<vmem>>, vector<1x128xf32>
      tpu.vector_store %arg7[%c0_32, %c0_33], %78 {strides = array<i32>} : memref<1x128xf32, #tpu.memory_space<vmem>>, vector<1x128xf32>,
    } else {
    }
    %c0 = arith.constant 0 : index
    %c0_1 = arith.constant 0 : index
    %3 = vector.load %arg2[%c0, %c0_1] : memref<9x128xf32, #tpu.memory_space<vmem>>, vector<9x128xf32>
    %c0_2 = arith.constant 0 : index
    %c0_3 = arith.constant 0 : index
    %4 = vector.load %arg3[%c0_2, %c0_3] : memref<1x128xi32, #tpu.memory_space<vmem>>, vector<1x128xi32>
    %c0_4 = arith.constant 0 : index
    %c0_5 = arith.constant 0 : index
    %5 = vector.load %arg4[%c0_4, %c0_5] : memref<9x1xf32, #tpu.memory_space<vmem>>, vector<9x1xf32>
    %c1_i32 = arith.constant 1 : i32
    %6 = arith.muli %arg0, %c1_i32 : i32
    %7 = arith.addi %6, %arg1 : i32
    %c128_i32 = arith.constant 128 : i32
    %8 = arith.muli %7, %c128_i32 : i32
    %9 = tpu.iota {dimensions = array<i32: 1>} : vector<1x128xi32>
    %10 = vector.broadcast %8 : i32 to vector<1x128xi32>
    %11 = arith.addi %10, %9 : vector<1x128xi32>
    %c8_i32 = arith.constant 8 : i32
    %12 = vector.broadcast %c8_i32 : i32 to vector<1x128xi32>
    %13 = arith.cmpi slt, %11, %12 : vector<1x128xi32>
    %cst = arith.constant 0.000000e+00 : f32
    %14 = vector.shape_cast %13 : vector<1x128xi1> to vector<1x128xi1>
    %15 = vector.broadcast %14 : vector<1x128xi1> to vector<9x128xi1>
    %16 = vector.broadcast %cst : f32 to vector<9x128xf32>
    %17 = arith.select %15, %3, %16 : vector<9x128xi1>, vector<9x128xf32>
    %c0_i32_6 = arith.constant 0 : i32
    %18 = vector.broadcast %c0_i32_6 : i32 to vector<1x128xi32>
    %19 = arith.cmpi sge, %4, %18 : vector<1x128xi32>
    %20 = arith.andi %13, %19 : vector<1x128xi1>
    %c9_i32 = arith.constant 9 : i32
    %21 = vector.broadcast %c9_i32 : i32 to vector<1x128xi32>
    %22 = arith.cmpi slt, %4, %21 : vector<1x128xi32>
    %23 = arith.andi %20, %22 : vector<1x128xi1>
    %c-1_i32 = arith.constant -1 : i32
    %24 = vector.broadcast %c-1_i32 : i32 to vector<1x128xi32>
    %25 = arith.select %23, %4, %24 : vector<1x128xi1>, vector<1x128xi32>
    %26 = tpu.iota {dimensions = array<i32: 0>} : vector<9x128xi32>
    %27 = vector.broadcast %25 : vector<1x128xi32> to vector<9x128xi32>
    %28 = arith.cmpi eq, %26, %27 : vector<9x128xi32>
    %cst_7 = arith.constant dense<0xFF800000> : vector<128xf32>
    %29 = vector.multi_reduction <maximumf>, %17, %cst_7 [0] : vector<9x128xf32> to vector<128xf32>
    %30 = vector.shape_cast %29 : vector<128xf32> to vector<1x128xf32>
    %31 = vector.broadcast %30 : vector<1x128xf32> to vector<9x128xf32>
    %32 = arith.subf %17, %31 : vector<9x128xf32>
    %33 = math.exp %32 : vector<9x128xf32>
    %cst_8 = arith.constant dense<0.000000e+00> : vector<128xf32>
    %34 = vector.multi_reduction <add>, %33, %cst_8 [0] : vector<9x128xf32> to vector<128xf32>
    %35 = vector.shape_cast %34 : vector<128xf32> to vector<1x128xf32>
    %36 = math.log %35 : vector<1x128xf32>
    %37 = arith.addf %30, %36 : vector<1x128xf32>
    %cst_9 = arith.constant 0.000000e+00 : f32
    %38 = vector.broadcast %cst_9 : f32 to vector<9x128xf32>
    %39 = arith.select %28, %17, %38 : vector<9x128xi1>, vector<9x128xf32>
    %cst_10 = arith.constant dense<0.000000e+00> : vector<128xf32>
    %40 = vector.multi_reduction <add>, %39, %cst_10 [0] : vector<9x128xf32> to vector<128xf32>
    %41 = vector.shape_cast %40 : vector<128xf32> to vector<1x128xf32>
    %cst_11 = arith.constant 0.000000e+00 : f32
    %42 = vector.shape_cast %5 : vector<9x1xf32> to vector<9x1xf32>
    %43 = vector.broadcast %42 : vector<9x1xf32> to vector<9x128xf32>
    %44 = vector.broadcast %cst_11 : f32 to vector<9x128xf32>
    %45 = arith.select %28, %43, %44 : vector<9x128xi1>, vector<9x128xf32>
    %cst_12 = arith.constant dense<0.000000e+00> : vector<128xf32>
    %46 = vector.multi_reduction <add>, %45, %cst_12 [0] : vector<9x128xf32> to vector<128xf32>
    %47 = vector.shape_cast %46 : vector<128xf32> to vector<1x128xf32>
    %48 = arith.subf %37, %41 : vector<1x128xf32>
    %49 = arith.mulf %47, %48 : vector<1x128xf32>
    %c0_i32_13 = arith.constant 0 : i32
    %50 = vector.broadcast %c0_i32_13 : i32 to vector<1x128xi32>
    %51 = arith.cmpi sge, %25, %50 : vector<1x128xi32>
    %52 = arith.extui %51 : vector<1x128xi1> to vector<1x128xi32>
    %53 = arith.sitofp %52 : vector<1x128xi32> to vector<1x128xf32>
    %54 = vector.broadcast %5 : vector<9x1xf32> to vector<9x128xf32>
    %55 = arith.mulf %54, %17 : vector<9x128xf32>
    %cst_14 = arith.constant dense<0.000000e+00> : vector<128xf32>
    %56 = vector.multi_reduction <add>, %55, %cst_14 [0] : vector<9x128xf32> to vector<128xf32>
    %57 = vector.shape_cast %56 : vector<128xf32> to vector<1x128xf32>
    %cst_15 = arith.constant 1.000000e+01 : f32
    %58 = vector.broadcast %cst_15 : f32 to vector<1x128xf32>
    %59 = arith.mulf %58, %37 : vector<1x128xf32>
    %60 = arith.subf %59, %57 : vector<1x128xf32>
    %61 = arith.mulf %60, %53 : vector<1x128xf32>
    %cst_16 = arith.constant 0.899999976 : f32
    %62 = vector.broadcast %cst_16 : f32 to vector<1x128xf32>
    %63 = arith.mulf %62, %49 : vector<1x128xf32>
    %cst_17 = arith.constant 0.0111111114 : f32
    %64 = vector.broadcast %cst_17 : f32 to vector<1x128xf32>
    %65 = arith.mulf %64, %61 : vector<1x128xf32>
    %66 = arith.addf %63, %65 : vector<1x128xf32>
    %c0_18 = arith.constant 0 : index
    %c0_19 = arith.constant 0 : index
    %67 = vector.load %arg6[%c0_18, %c0_19] : memref<1x128xf32, #tpu.memory_space<vmem>>, vector<1x128xf32>
    %68 = arith.addf %67, %66 : vector<1x128xf32>
    %c0_20 = arith.constant 0 : index
    %c0_21 = arith.constant 0 : index
    %69 = vector.load %arg6[%c0_20, %c0_21] : memref<1x128xf32, #tpu.memory_space<vmem>>, vector<1x128xf32>
    tpu.vector_store %arg6[%c0_20, %c0_21], %68 {strides = array<i32>} : memref<1x128xf32, #tpu.memory_space<vmem>>, vector<1x128xf32>,
    %c0_22 = arith.constant 0 : index
    %c0_23 = arith.constant 0 : index
    %70 = vector.load %arg7[%c0_22, %c0_23] : memref<1x128xf32, #tpu.memory_space<vmem>>, vector<1x128xf32>
    %71 = arith.addf %70, %47 : vector<1x128xf32>
    %c0_24 = arith.constant 0 : index
    %c0_25 = arith.constant 0 : index
    %72 = vector.load %arg7[%c0_24, %c0_25] : memref<1x128xf32, #tpu.memory_space<vmem>>, vector<1x128xf32>
    tpu.vector_store %arg7[%c0_24, %c0_25], %71 {strides = array<i32>} : memref<1x128xf32, #tpu.memory_space<vmem>>, vector<1x128xf32>,
    %c0_i32_26 = arith.constant 0 : i32
    %73 = arith.cmpi eq, %arg1, %c0_i32_26 : i32
    %74 = arith.extui %73 : i1 to i32
    %c0_i32_27 = arith.constant 0 : i32
    %75 = arith.cmpi ne, %74, %c0_i32_27 : i32
    scf.if %75 {
      %c0_28 = arith.constant 0 : index
      %c0_29 = arith.constant 0 : index
      %76 = vector.load %arg6[%c0_28, %c0_29] : memref<1x128xf32, #tpu.memory_space<vmem>>, vector<1x128xf32>
      %77 = vector.shape_cast %76 : vector<1x128xf32> to vector<1x1x128xf32>
      %cst_30 = arith.constant dense<0.000000e+00> : vector<1xf32>
      %78 = vector.multi_reduction <add>, %77, %cst_30 [1, 2] : vector<1x1x128xf32> to vector<1xf32>
      %79 = vector.shape_cast %78 : vector<1xf32> to vector<1x1x1xf32>
      %80 = vector.extract %79[0, 0, 0] : f32 from vector<1x1x1xf32>
      %81 = tpu.iota {dimensions = array<i32: 0>} : vector<8x128xi32>
      %82 = tpu.iota {dimensions = array<i32: 1>} : vector<8x128xi32>
      %c0_i32_31 = arith.constant 0 : i32
      %83 = vector.broadcast %c0_i32_31 : i32 to vector<8x128xi32>
      %84 = arith.cmpi eq, %81, %83 : vector<8x128xi32>
      %c0_i32_32 = arith.constant 0 : i32
      %85 = vector.broadcast %c0_i32_32 : i32 to vector<8x128xi32>
      %86 = arith.cmpi eq, %82, %85 : vector<8x128xi32>
      %87 = arith.andi %84, %86 : vector<8x128xi1>
      %cst_33 = arith.constant 0.000000e+00 : f32
      %88 = vector.broadcast %80 : f32 to vector<8x128xf32>
      %89 = vector.broadcast %cst_33 : f32 to vector<8x128xf32>
      %90 = arith.select %87, %88, %89 : vector<8x128xi1>, vector<8x128xf32>
      %c0_34 = arith.constant 0 : index
      %c0_35 = arith.constant 0 : index
      %91 = vector.load %arg7[%c0_34, %c0_35] : memref<1x128xf32, #tpu.memory_space<vmem>>, vector<1x128xf32>
      %92 = vector.shape_cast %91 : vector<1x128xf32> to vector<1x1x128xf32>
      %cst_36 = arith.constant dense<0.000000e+00> : vector<1xf32>
      %93 = vector.multi_reduction <add>, %92, %cst_36 [1, 2] : vector<1x1x128xf32> to vector<1xf32>
      %94 = vector.shape_cast %93 : vector<1xf32> to vector<1x1x1xf32>
      %95 = vector.extract %94[0, 0, 0] : f32 from vector<1x1x1xf32>
      %c0_i32_37 = arith.constant 0 : i32
      %96 = vector.broadcast %c0_i32_37 : i32 to vector<8x128xi32>
      %97 = arith.cmpi eq, %81, %96 : vector<8x128xi32>
      %c1_i32_38 = arith.constant 1 : i32
      %98 = vector.broadcast %c1_i32_38 : i32 to vector<8x128xi32>
      %99 = arith.cmpi eq, %82, %98 : vector<8x128xi32>
      %100 = arith.andi %97, %99 : vector<8x128xi1>
      %101 = vector.broadcast %95 : f32 to vector<8x128xf32>
      %102 = arith.select %100, %101, %90 : vector<8x128xi1>, vector<8x128xf32>
      %c0_39 = arith.constant 0 : index
      %c0_40 = arith.constant 0 : index
      %103 = vector.load %arg5[%c0_39, %c0_40] : memref<8x128xf32, #tpu.memory_space<vmem>>, vector<8x128xf32>
      tpu.vector_store %arg5[%c0_39, %c0_40], %102 {strides = array<i32>} : memref<8x128xf32, #tpu.memory_space<vmem>>, vector<8x128xf32>,
    } else {
    }
    return
  }
  func.func @transform_0(%arg0: i32, %arg1: i32) -> (i32, i32) {
    %c1_i32 = arith.constant 1 : i32
    %0 = arith.muli %arg0, %c1_i32 : i32
    %1 = arith.addi %0, %arg1 : i32
    %c0_i32 = arith.constant 0 : i32
    %2 = arith.minsi %1, %c0_i32 : i32
    %c0_i32_0 = arith.constant 0 : i32
    %c0_i32_1 = arith.constant 0 : i32
    return %c0_i32_0, %2 : i32, i32
  }
  func.func @transform_1(%arg0: i32, %arg1: i32) -> (i32, i32) {
    %c1_i32 = arith.constant 1 : i32
    %0 = arith.muli %arg0, %c1_i32 : i32
    %1 = arith.addi %0, %arg1 : i32
    %c0_i32 = arith.constant 0 : i32
    %2 = arith.minsi %1, %c0_i32 : i32
    %c0_i32_0 = arith.constant 0 : i32
    %c0_i32_1 = arith.constant 0 : i32
    return %c0_i32_0, %2 : i32, i32
  }
  func.func @transform_2(%arg0: i32, %arg1: i32) -> (i32, i32) {
    %c0_i32 = arith.constant 0 : i32
    %c0_i32_0 = arith.constant 0 : i32
    %c0_i32_1 = arith.constant 0 : i32
    return %c0_i32, %c0_i32_0 : i32, i32
  }
  func.func @transform_3(%arg0: i32, %arg1: i32) -> (i32, i32) {
    %c0_i32 = arith.constant 0 : i32
    %c0_i32_0 = arith.constant 0 : i32
    return %arg0, %c0_i32 : i32, i32
  }
}

</mosaic_0001>

<llo_original>
// kernel: tpu_custom_call.1
$region0: #{tpu_custom_call.1}
  #allocation0 [shape = 'u32[]', space=smem, size = 0x4, offset = 0x4, fixed_abs, tag = 'smem constant byte address 0x4 - core index']
  #allocation1 [shape = 'u32[72,128]{1,0:T(1,128)}', space=vmem, size = 0x9000, scoped, tag = 'internal scratch']
  #allocation2 [shape = 'f32[1,128]{1,0:T(1,128)}', space=vmem, size = 0x200, scoped, tag = 'scratch operand']
  #allocation3 [shape = 'f32[1,128]{1,0:T(1,128)}', space=vmem, size = 0x200, scoped, tag = 'scratch operand']
  %s0 = inlined_call_operand.vmem [shape: f32[9,128], index: 0, kind: input, shape index: {}]
  %s1 = inlined_call_operand.vmem [shape: s32[1,128], index: 1, kind: input, shape index: {}]
  %s2 = inlined_call_operand.vmem [shape: f32[9,1], index: 2, kind: input, shape index: {}]
  %s3 = inlined_call_operand.hbm [shape: f32[16,128], index: 3, kind: output, shape index: {}]
  %s4 = sld [smem:[#allocation0]]
  $region53: #{tpu_custom_call.1} parent=0
    _
  %s6 = ssub.s32 1, %s4
  %s7 = scalar_select 0, %s6, %s4
  $region1: #{tpu_custom_call.1} parent=0
    #allocation4 [shape = 'u8[8192]{0}', space=vmem, size = 0x2000, scoped, tag = 'output window, operand 0']
    #allocation5 [shape = 's32[2]{0}', space=sflag, size = 0x8, scoped, tag = 'scoped memory for tpu_custom_call.1']
    %8 = vsyncpa [#allocation5], 0
    %s9 = scalar_lea.sflag [#allocation5], 1
    %10 = vsyncpa %s9, 0
    loop: start=0, step=1, limit=4
    $region2: #{tpu_custom_call.1} parent=1 // loop_pre_header
      _
    $region3: #{tpu_custom_call.1} parent=1 // loop_header
      %s12 = sphi 0, %s16
      %p13 = scmp.ge.s32.totalorder %s12, 4
      %s19 = sphi 0, %s31
      %s20 = sphi 0, %s27
      %s21 = sphi 0, %s19
      %s22 = sphi 0, %s20
      %s23 = sphi 0, %s21
      %s24 = sphi 0, %s22
      %s40 = sphi 0, %s42
      %s43 = sphi 0, %s40
      %s44 = sphi 0, %s43
      %s60 = sphi 0, %s44
      %s72 = sphi 0, %s74
      %s75 = sphi 0, %s72
      %s76 = sphi 0, %s75
      %s92 = sphi 0, %s76
      %s96 = sphi 0, %s96
      %s98 = sphi 0, %s96
      %s99 = sphi 0, %s98
      %s113 = sphi 0, %s99
      %s119 = sphi 0, %s121
      %s122 = sphi 0, %s119
      %s123 = sphi 0, %s122
      %s139 = sphi 0, %s123
    $region4: #{tpu_custom_call.1} parent=1 // loop_header_branch
      %15 = sbr.rel (%p13) target = $region8
    $region5: #{tpu_custom_call.1} parent=1 // loop_body
      %s17 = ssub.s32 %s12, 1
      %s18 = ssub.s32 %s12, 2
      %s25 = sadd.s32 1, %s20
      %p26 = scmp.ge.s32.totalorder %s25, 1
      %s27 = scalar_select %p26, 0, %s25
      %s28 = sadd.s32 1, %s19
      %s29 = scalar_select %p26, %s28, %s19
      %p30 = scmp.ge.s32.totalorder %s29, 2
      %s31 = scalar_select %p30, 0, %s29
      %s32 = sadd.s32 %s19, %s20
      %p33 = scmp.lt.s32.totalorder %s32, 0
      %s34 = scalar_select %p33, %s32, 0
      %s35 = sadd.s32 %s31, %s27
      %p36 = scmp.lt.s32.totalorder %s35, 0
      %s37 = scalar_select %p36, %s35, 0
      %s38 = ssub.s32 %s34, %s37
      %p39 = scmp.eq.s32.totalorder %s38, 0
      %s41 = sadd.s32 %s40, 1
      %s42 = scalar_select %p39, %s40, %s41
      %p45 = pneg %p39
      %p46 = scmp.eq.s32.totalorder %s12, 1
      %p47 = por %p45, %p46
      %p48 = scmp.ne.s32.totalorder %s40, %s43
      %p49 = scmp.eq.s32.totalorder %s12, 0
      %p50 = por %p48, %p49
      %p51 = scmp.ne.s32.totalorder %s40, %s43
      %p52 = scmp.eq.s32.totalorder %s17, 1
      %p53 = por %p51, %p52
      %p54 = scmp.ne.s32.totalorder %s43, %s44
      %p55 = scmp.eq.s32.totalorder %s17, 0
      %p56 = por %p54, %p55
      %p57 = scmp.ne.s32.totalorder %s43, %s44
      %p58 = scmp.eq.s32.totalorder %s18, 1
      %p59 = por %p57, %p58
      %p61 = scmp.ne.s32.totalorder %s44, %s60
      %p62 = scmp.eq.s32.totalorder %s18, 0
      %p63 = por %p61, %p62
      %s64 = sadd.s32 %s19, %s20
      %p65 = scmp.lt.s32.totalorder %s64, 0
      %s66 = scalar_select %p65, %s64, 0
      %s67 = sadd.s32 %s31, %s27
      %p68 = scmp.lt.s32.totalorder %s67, 0
      %s69 = scalar_select %p68, %s67, 0
      %s70 = ssub.s32 %s66, %s69
      %p71 = scmp.eq.s32.totalorder %s70, 0
      %s73 = sadd.s32 %s72, 1
      %s74 = scalar_select %p71, %s72, %s73
      %p77 = pneg %p71
      %p78 = scmp.eq.s32.totalorder %s12, 1
      %p79 = por %p77, %p78
      %p80 = scmp.ne.s32.totalorder %s72, %s75
      %p81 = scmp.eq.s32.totalorder %s12, 0
      %p82 = por %p80, %p81
      %p83 = scmp.ne.s32.totalorder %s72, %s75
      %p84 = scmp.eq.s32.totalorder %s17, 1
      %p85 = por %p83, %p84
      %p86 = scmp.ne.s32.totalorder %s75, %s76
      %p87 = scmp.eq.s32.totalorder %s17, 0
      %p88 = por %p86, %p87
      %p89 = scmp.ne.s32.totalorder %s75, %s76
      %p90 = scmp.eq.s32.totalorder %s18, 1
      %p91 = por %p89, %p90
      %p93 = scmp.ne.s32.totalorder %s76, %s92
      %p94 = scmp.eq.s32.totalorder %s18, 0
      %p95 = por %p93, %p94
      %s97 = sadd.s32 %s96, 1
      %p100 = scmp.eq.s32.totalorder %s12, 1
      %p101 = scmp.ne.s32.totalorder %s96, %s98
      %p102 = scmp.eq.s32.totalorder %s12, 0
      %p103 = por %p101, %p102
      %p104 = scmp.ne.s32.totalorder %s96, %s98
      %p105 = scmp.eq.s32.totalorder %s17, 1
      %p106 = por %p104, %p105
      %p107 = scmp.ne.s32.totalorder %s98, %s99
      %p108 = scmp.eq.s32.totalorder %s17, 0
      %p109 = por %p107, %p108
      %p110 = scmp.ne.s32.totalorder %s98, %s99
      %p111 = scmp.eq.s32.totalorder %s18, 1
      %p112 = por %p110, %p111
      %p114 = scmp.ne.s32.totalorder %s99, %s113
      %p115 = scmp.eq.s32.totalorder %s18, 0
      %p116 = por %p114, %p115
      %s117 = ssub.s32 %s19, %s31
      %p118 = scmp.eq.s32.totalorder %s117, 0
      %s120 = sadd.s32 %s119, 1
      %s121 = scalar_select %p118, %s119, %s120
      %p124 = pneg %p118
      %p125 = scmp.eq.s32.totalorder %s12, 1
      %p126 = por %p124, %p125
      %p127 = scmp.ne.s32.totalorder %s119, %s122
      %p128 = scmp.eq.s32.totalorder %s12, 0
      %p129 = por %p127, %p128
      %p130 = scmp.ne.s32.totalorder %s119, %s122
      %p131 = scmp.eq.s32.totalorder %s17, 1
      %p132 = por %p130, %p131
      %p133 = scmp.ne.s32.totalorder %s122, %s123
      %p134 = scmp.eq.s32.totalorder %s17, 0
      %p135 = por %p133, %p134
      %p136 = scmp.ne.s32.totalorder %s122, %s123
      %p137 = scmp.eq.s32.totalorder %s18, 1
      %p138 = por %p136, %p137
      %p140 = scmp.ne.s32.totalorder %s123, %s139
      %p141 = scmp.eq.s32.totalorder %s18, 0
      %p142 = por %p140, %p141
      %p143 = scmp.le.s32.totalorder 1, %s12
      %p144 = scmp.lt.s32.totalorder %s12, 3
      %p145 = pnand %p143, %p144
      %p146 = pneg %p145
      // Predicated region
      $region9: #{tpu_custom_call.1} parent=5 // pred_check
        _
      $region10: #{tpu_custom_call.1} parent=5 // pred_check_branch
        %148 = sbr.rel (%p145) target = $region12
      $region11: #{tpu_custom_call.1} parent=5 // pred_region
        %s149 = ssub.s32 %s12, 1
        // Predicated region
        $region13: #{tpu_custom_call.1} parent=11 // pred_check
          %p150 = pneg %p109
        $region14: #{tpu_custom_call.1} parent=11 // pred_check_branch
          %152 = sbr.rel (%p150) target = $region16
        $region15: #{tpu_custom_call.1} parent=11 // pred_region
          _
        $region16: #{tpu_custom_call.1} parent=11 // pred_fallthru
          _
      $region12: #{tpu_custom_call.1} parent=5 // pred_fallthru
        _
      %p153 = scmp.lt.s32.totalorder %s12, 2
      // Predicated region
      $region17: #{tpu_custom_call.1} parent=5 // pred_check
        %p154 = pneg %p153
      $region18: #{tpu_custom_call.1} parent=5 // pred_check_branch
        %156 = sbr.rel (%p154) target = $region20
      $region19: #{tpu_custom_call.1} parent=5 // pred_region
        // Predicated region
        $region21: #{tpu_custom_call.1} parent=19 // pred_check
          %p157 = pneg %p50
        $region22: #{tpu_custom_call.1} parent=19 // pred_check_branch
          %159 = sbr.rel (%p157) target = $region24
        $region23: #{tpu_custom_call.1} parent=19 // pred_region
          %s160 = sadd.s32 %s19, %s20
          %p161 = scmp.lt.s32.totalorder %s160, 0
          %s162 = scalar_select %p161, %s160, 0
          %p163 = scmp.lt.s32.totalorder %s162, 0
          %s164 = scalar_select %p163, %s162, 0
          %s165 = smul.addr %s164, 8
          %s166 = scalar_lea.vmem %s0, %s165
          %s167 = sadd.s32 %s19, %s20
          %p168 = scmp.lt.s32.totalorder %s167, 0
          %s169 = scalar_select %p168, %s167, 0
        $region24: #{tpu_custom_call.1} parent=19 // pred_fallthru
          _
        // Predicated region
        $region25: #{tpu_custom_call.1} parent=19 // pred_check
          %p170 = pneg %p82
        $region26: #{tpu_custom_call.1} parent=19 // pred_check_branch
          %172 = sbr.rel (%p170) target = $region28
        $region27: #{tpu_custom_call.1} parent=19 // pred_region
          %s173 = sadd.s32 %s19, %s20
          %p174 = scmp.lt.s32.totalorder %s173, 0
          %s175 = scalar_select %p174, %s173, 0
          %p176 = scmp.lt.s32.totalorder %s175, 0
          %s177 = scalar_select %p176, %s175, 0
          %s178 = scalar_lea.vmem %s1, %s177
          %s179 = sadd.s32 %s19, %s20
          %p180 = scmp.lt.s32.totalorder %s179, 0
          %s181 = scalar_select %p180, %s179, 0
        $region28: #{tpu_custom_call.1} parent=19 // pred_fallthru
          _
      $region20: #{tpu_custom_call.1} parent=5 // pred_fallthru
        _
      %p182 = scmp.le.s32.totalorder 1, %s12
      %p183 = scmp.lt.s32.totalorder %s12, 3
      %p184 = pnand %p182, %p183
      %p185 = pneg %p184
      // Predicated region
      $region29: #{tpu_custom_call.1} parent=5 // pred_check
        _
      $region30: #{tpu_custom_call.1} parent=5 // pred_check_branch
        %187 = sbr.rel (%p184) target = $region32
      $region31: #{tpu_custom_call.1} parent=5 // pred_region
        %s188 = ssub.s32 %s12, 1
        %s189 = sadd.s32 %s21, %s22
        %p190 = scmp.lt.s32.totalorder %s189, 0
        %s191 = scalar_select %p190, %s189, 0
        %p192 = scmp.lt.s32.totalorder %s191, 0
        %s193 = scalar_select %p192, %s191, 0
        %s194 = smul.addr %s193, 8
        %s195 = scalar_lea.vmem %s0, %s194
        %p196 = pneg %p56
        %p197 = pneg %p53
        %s198 = sadd.s32 %s21, %s22
        %p199 = scmp.lt.s32.totalorder %s198, 0
        %s200 = scalar_select %p199, %s198, 0
        %p201 = scmp.lt.s32.totalorder %s200, 0
        %s202 = scalar_select %p201, %s200, 0
        %s203 = scalar_lea.vmem %s1, %s202
        %p204 = pneg %p88
        %p205 = pneg %p85
        %p206 = pneg %p109
        %p207 = pneg %p106
        %p208 = pneg %p135
        %p209 = pneg %p132
        %s210 = sand.u32 %s122, 1
        %s211 = scalar_lea.sflag [#allocation5], %s210
        %s212 = sand.u32 %s122, 1
        %s213 = smul.addr %s212, 8
        %s214 = scalar_lea.vmem [#allocation4], %s213
        %s215 = sadd.s32 %s21, %s22
        %p216 = scmp.lt.s32.totalorder %s215, 0
        %s217 = scalar_select %p216, %s215, 0
        %p218 = scmp.lt.s32.totalorder %s217, 0
        %s219 = scalar_select %p218, %s217, 0
        %s220 = smul.addr %s219, 8
        %s221 = scalar_lea.vmem %s0, %s220
        %s222 = sadd.s32 %s21, %s22
        %p223 = scmp.lt.s32.totalorder %s222, 0
        %s224 = scalar_select %p223, %s222, 0
        %s225 = sadd.s32 %s21, %s22
        %p226 = scmp.lt.s32.totalorder %s225, 0
        %s227 = scalar_select %p226, %s225, 0
        %p228 = scmp.lt.s32.totalorder %s227, 0
        %s229 = scalar_select %p228, %s227, 0
        %s230 = scalar_lea.vmem %s1, %s229
        %s231 = sadd.s32 %s21, %s22
        %p232 = scmp.lt.s32.totalorder %s231, 0
        %s233 = scalar_select %p232, %s231, 0
        %p234 = scmp.eq.s32.totalorder %s22, 0
        // Predicated region
        $region33: #{tpu_custom_call.1} parent=31 // pred_check
          %p235 = pneg %p234
        $region34: #{tpu_custom_call.1} parent=31 // pred_check_branch
          %237 = sbr.rel (%p235) target = $region36
        $region35: #{tpu_custom_call.1} parent=31 // pred_region
          %238 = vst [vmem:[#allocation2] sm:$0x1] 0.0
          %239 = vst [vmem:[#allocation3] sm:$0x1] 0.0
        $region36: #{tpu_custom_call.1} parent=31 // pred_fallthru
          _
        %v240 = vld [vmem:[%s221] sm:$0xff]
        %v241 = vld [vmem:[%s221 + $0x8] sm:$0x1]
        %v242 = vld [vmem:[%s230] sm:$0x1]
        %v243 = vld [vmem:[%s2] sm:$0xff]
        %v244 = vld [vmem:[%s2 + $0x8] sm:$0x1]
        %s245 = sadd.s32 %s21, %s22
        %s246 = smul.u32 %s245, 128
        %v247 = vlaneseq
        %v248 = vand.u32 %v247, 127
        %v249 = vstv %s246
        %v250 = vadd.s32 %v249, %v248
        %vm251 = vcmp.lt.s32.totalorder %v250, 8
        %v252 = vsel %vm251, 1, 0
        %vm253 = vcmp.eq.s32.totalorder %v252, 1
        %v254 = vsel %vm253, %v240, 0.0
        %v255 = vsel %vm253, %v241, 0.0
        %vm256 = vcmp.ge.s32.totalorder %v242, 0
        %vm257 = vmand %vm251, %vm256
        %vm258 = vcmp.lt.s32.totalorder %v242, 9
        %vm259 = vmand %vm257, %vm258
        %v260 = vsel %vm259, %v242, 4294967295
        %v261 = vlaneseq
        %v262 = vshrl.u32 %v261, 7
        %v263 = vadd.s32 %v262, 8
        %v264 = vperm.slane %v260, 0
        %vm265 = vcmp.eq.s32.totalorder %v262, %v264
        %vm266 = vcmp.eq.s32.totalorder %v263, %v264
        %vm267 = vcmask 1040384
        %v268 = vsel %vm267, %v255, -inf
        %v269 = vmax.f32 %v254, %v268
        %v270 = vrot.slane %v269, 4
        %v271 = vmax.f32 %v269, %v270
        %v272 = vrot.slane %v271, 2
        %v273 = vmax.f32 %v271, %v272
        %v274 = vrot.slane %v273, 1
        %v275 = vmax.f32 %v273, %v274
        %v276 = vsub.f32 %v254, %v275
        %v277 = vsub.f32 %v255, %v275
        %v278 = vmul.f32 %v276, 1.442695
        %v279 = vpow.pop %v278
        %v280 = vmul.f32 %v277, 1.442695
        %v281 = vpow.pop %v280
        %v282 = vsel %vm267, %v281, 0.0
        %v283 = vadd.f32 %v279, %v282
        %v284 = vrot.slane %v283, 4
        %v285 = vadd.f32 %v283, %v284
        %v286 = vrot.slane %v285, 2
        %v287 = vadd.f32 %v285, %v286
        %v288 = vrot.slane %v287, 1
        %v289 = vadd.f32 %v287, %v288
        %v290 = vlog2.pop %v289
        %v291 = vmul.f32 %v290, 0.6931472
        %v292 = vadd.f32 %v275, %v291
        %v293 = vsel %vm265, %v254, 0.0
        %v294 = vsel %vm266, %v255, 0.0
        %v295 = vsel %vm267, %v294, 0.0
        %v296 = vadd.f32 %v293, %v295
        %v297 = vrot.slane %v296, 4
        %v298 = vadd.f32 %v296, %v297
        %v299 = vrot.slane %v298, 2
        %v300 = vadd.f32 %v298, %v299
        %v301 = vrot.slane %v300, 1
        %v302 = vadd.f32 %v300, %v301
        %304 = vset.pattern.permute.xlu0 0
        %305 = vperm.xlu0 %304, %v243
        %v306 = vpop.permute.xlu0 %305
        %309 = vset.pattern.permute.xlu0 0
        %310 = vperm.xlu0 %309, %v244
        %v311 = vpop.permute.xlu0 %310
        %v313 = vsel %vm265, %v306, 0.0
        %v314 = vsel %vm266, %v311, 0.0
        %v315 = vsel %vm267, %v314, 0.0
        %v316 = vadd.f32 %v313, %v315
        %v317 = vrot.slane %v316, 4
        %v318 = vadd.f32 %v316, %v317
        %v319 = vrot.slane %v318, 2
        %v320 = vadd.f32 %v318, %v319
        %v321 = vrot.slane %v320, 1
        %v322 = vadd.f32 %v320, %v321
        %v323 = vsub.f32 %v292, %v302
        %v324 = vmul.f32 %v322, %v323
        %vm325 = vcmp.ge.s32.totalorder %v260, 0
        %v326 = vsel %vm325, 1, 0
        %v327 = vcvt.s32.f32 %v326
        %v328 = vmul.f32 %v306, %v254
        %v329 = vmul.f32 %v311, %v255
        %v330 = vsel %vm267, %v329, 0.0
        %v331 = vadd.f32 %v328, %v330
        %v332 = vrot.slane %v331, 4
        %v333 = vadd.f32 %v331, %v332
        %v334 = vrot.slane %v333, 2
        %v335 = vadd.f32 %v333, %v334
        %v336 = vrot.slane %v335, 1
        %v337 = vadd.f32 %v335, %v336
        %v338 = vmul.f32 %v292, 10.0
        %v339 = vsub.f32 %v338, %v337
        %v340 = vmul.f32 %v339, %v327
        %v341 = vmul.f32 %v324, 0.9
        %v342 = vmul.f32 %v340, 0.011111111
        %v343 = vadd.f32 %v341, %v342
        %v344 = vld [vmem:[#allocation2] sm:$0x1]
        %v345 = vadd.f32 %v344, %v343
        %346 = vst [vmem:[#allocation2] sm:$0x1] %v345
        %v347 = vld [vmem:[#allocation3] sm:$0x1]
        %v348 = vadd.f32 %v347, %v322
        %349 = vst [vmem:[#allocation3] sm:$0x1] %v348
        // Predicated region
        $region37: #{tpu_custom_call.1} parent=31 // pred_check
          %p350 = pneg %p234
        $region38: #{tpu_custom_call.1} parent=31 // pred_check_branch
          %352 = sbr.rel (%p350) target = $region40
        $region39: #{tpu_custom_call.1} parent=31 // pred_region
          %v353 = vld [vmem:[#allocation2] sm:$0x1]
          %v354 = vsel %vm267, %v353, 0.0
          %355 = vadd.xlane.f32.xlu0 %v354
          %v356 = vpop.xlane.xlu0 %355
          %v357 = vrot.slane %v356, 4
          %v358 = vadd.f32 %v356, %v357
          %v359 = vrot.slane %v358, 2
          %v360 = vadd.f32 %v358, %v359
          %v361 = vrot.slane %v360, 1
          %v362 = vadd.f32 %v360, %v361
          %s363 = vtos %v362
          %vm364 = vcmp.eq.s32.totalorder %v262, 0
          %vm365 = vcmp.eq.s32.totalorder %v248, 0
          %vm366 = vmand %vm364, %vm365
          %v367 = vstv %s363
          %v368 = vsel %vm366, %v367, 0.0
          %v369 = vld [vmem:[#allocation3] sm:$0x1]
          %v370 = vsel %vm267, %v369, 0.0
          %371 = vadd.xlane.f32.xlu0 %v370
          %v372 = vpop.xlane.xlu0 %371
          %v373 = vrot.slane %v372, 4
          %v374 = vadd.f32 %v372, %v373
          %v375 = vrot.slane %v374, 2
          %v376 = vadd.f32 %v374, %v375
          %v377 = vrot.slane %v376, 1
          %v378 = vadd.f32 %v376, %v377
          %s379 = vtos %v378
          %vm380 = vcmp.eq.s32.totalorder %v248, 1
          %vm381 = vmand %vm364, %vm380
          %v382 = vstv %s379
          %v383 = vsel %vm381, %v382, %v368
          %384 = vst [vmem:[%s214] sm:$0xff] %v383
        $region40: #{tpu_custom_call.1} parent=31 // pred_fallthru
          _
        %s385 = sand.u32 %s122, 1
        %s386 = scalar_lea.sflag [#allocation5], %s385
        %s387 = sand.u32 %s122, 1
        %s388 = smul.addr %s387, 8
        %s389 = scalar_lea.vmem [#allocation4], %s388
        // Predicated region
        $region41: #{tpu_custom_call.1} parent=31 // pred_check
          %p390 = pneg %p132
        $region42: #{tpu_custom_call.1} parent=31 // pred_check_branch
          %392 = sbr.rel (%p390) target = $region44
        $region43: #{tpu_custom_call.1} parent=31 // pred_region
          %394 = vsyncadd %s386, 0
          %s395 = smul.addr %s21, 8
          %s396 = scalar_lea.hbm %s3, %s395
          %s398 = sshll.u32 %s389, 4
          %s399 = int_to_ptr.vmem [resolvable:$true] %s398
          %s400 = sshll.u32 %s396, 4
          %s401 = int_to_ptr.hbm [resolvable:$true] %s400
          %403 = dma.vmem_to_hbm [thread:$0]  %s399, 128, %s401, %s386
        $region44: #{tpu_custom_call.1} parent=31 // pred_fallthru
          _
      $region32: #{tpu_custom_call.1} parent=5 // pred_fallthru
        _
      %p404 = scmp.le.s32.totalorder 2, %s12
      // Predicated region
      $region45: #{tpu_custom_call.1} parent=5 // pred_check
        %p405 = pneg %p404
      $region46: #{tpu_custom_call.1} parent=5 // pred_check_branch
        %407 = sbr.rel (%p405) target = $region48
      $region47: #{tpu_custom_call.1} parent=5 // pred_region
        %s408 = ssub.s32 %s12, 2
        // Predicated region
        $region49: #{tpu_custom_call.1} parent=47 // pred_check
          %p409 = pneg %p138
        $region50: #{tpu_custom_call.1} parent=47 // pred_check_branch
          %411 = sbr.rel (%p409) target = $region52
        $region51: #{tpu_custom_call.1} parent=47 // pred_region
          %s412 = sand.u32 %s123, 1
          %s413 = scalar_lea.sflag [#allocation5], %s412
          %s414 = sand.u32 %s123, 1
          %s415 = smul.addr %s414, 8
          %s416 = scalar_lea.vmem [#allocation4], %s415
          %418 = dma.done %s413, 128
        $region52: #{tpu_custom_call.1} parent=47 // pred_fallthru
          _
      $region48: #{tpu_custom_call.1} parent=5 // pred_fallthru
        _
    $region6: #{tpu_custom_call.1} parent=1 // loop_footer
      %s16 = sadd.s32 1, %s12
    $region7: #{tpu_custom_call.1} parent=1 // loop_footer_branch
      %11 = sbr.rel target = $region3
    $region8: #{tpu_custom_call.1} parent=1 // loop_exit
      _
    %419 = vsyncpa [#allocation5], 1
    %s420 = scalar_lea.sflag [#allocation5], 1
    %421 = vsyncpa %s420, 1

</llo_original>
